<compile_context>
chip_gen: v7x
topology: tpu7x:2x2x1
jax: 0.10.0
libtpu: 0.0.40
codegen_flags: <defaults>
</compile_context>

<pallas_src>
import jax
import jax.numpy as jnp
from jax import lax
from jax.experimental import pallas as pl
from jax.experimental.pallas import tpu as pltpu


def _cdiv(a, b):
    return -(-a // b)


def _efdmix_ranked_mix_kernel(perm_ref, a_ref, b_ref, lmda_ref, o_ref):
    """Ranked-domain EFDM mix for one (batch, row-tile) grid step.

    perm_ref : (B,) int32 scalar-prefetch (SMEM) -- consumed by the index_maps
    a_ref    : (TR, 128) this batch's sorted values
    b_ref    : (TR, 128) partner batch's sorted values (batch chosen via perm)
    lmda_ref : (B,) f32 in SMEM
    o_ref    : (TR, 128) mixed ranked values
    """
    del perm_ref  # only used by the index_maps
    lam = lmda_ref[pl.program_id(0)]          # grid axis 0 == batch
    o_ref[...] = (lam * a_ref[...] + (1.0 - lam) * b_ref[...]).astype(o_ref.dtype)


def _plan_rows(total, row_target=512):
    """Lane-dense plan: flatten `total` elements into (rows, 128) with
    rows % row_tile == 0 and row_tile % 8 == 0.  Prefer an exact divisor
    of the (sublane-aligned) row count; otherwise pad a little."""
    row_target = max(8, (row_target // 8) * 8)
    r0 = _cdiv(total, 128)
    r0 = _cdiv(r0, 8) * 8                      # sublane-align row count
    if r0 <= row_target:
        return r0, r0                          # one lane-dense block per batch
    # aim for >= ~4 row steps per batch so DMA has iterations to hide behind
    target = max(8, min(row_target, ((r0 // 4) // 8) * 8))
    for tr in range(target, 63, -8):           # prefer no-padding divisors
        if r0 % tr == 0:
            return r0, tr
    rows = _cdiv(r0, target) * target          # small padding, fixed tile
    return rows, target


def efdmix_forward(x, lmda, perm, *, row_tile_target=512):
    """EFDMix forward (assumes training=True and the Bernoulli(p) coin hit)."""
    B, C, H, W = x.shape
    N = H * W
    total = C * N
    xv = x.reshape(B, C, N)

    # --- plain-JAX glue -------------------------------------------------------
    # TODO(synk): the per-row sort and the data-dependent rank->position gather
    # are cross-lane permutations with runtime indices; no clean Pallas TPU
    # equivalent, so they stay in XLA.  sort+argsort are fused into one lax.sort.
    iota = lax.broadcasted_iota(jnp.int32, xv.shape, 2)
    value_x, index_x = lax.sort((xv, iota), dimension=-1, num_keys=1, is_stable=True)
    _, inverse_index = lax.sort((index_x, iota), dimension=-1, num_keys=1, is_stable=True)

    # --- lane-dense (8,128)-aligned staging of the sorted values --------------
    rows, tr = _plan_rows(total, row_tile_target)
    pad_total = rows * 128
    flat = value_x.reshape(B, total)
    if pad_total != total:
        flat = jnp.pad(flat, ((0, 0), (0, pad_total - total)))
    value_pad = flat.reshape(B, rows, 128)

    grid = (B, rows // tr)
    itemsize = jnp.dtype(x.dtype).itemsize
    block_bytes = tr * 128 * itemsize
    # 3 tiled operands (self, partner, out), double-buffered, plus headroom.
    vmem_limit = int(min(32 << 20, max(16 << 20, 3 * 2 * block_bytes + (2 << 20))))

    def tile(index_map):
        return pl.BlockSpec((None, tr, 128), index_map)

    mixed_pad = pl.pallas_call(
        _efdmix_ranked_mix_kernel,
        out_shape=jax.ShapeDtypeStruct((B, rows, 128), x.dtype),
        grid_spec=pltpu.PrefetchScalarGridSpec(
            num_scalar_prefetch=1,                       # perm -> SMEM
            grid=grid,
            in_specs=[
                tile(lambda b, j, perm_s: (b, j, 0)),            # value_x[b]
                tile(lambda b, j, perm_s: (perm_s[b], j, 0)),    # value_x[perm[b]]
                pl.BlockSpec(memory_space=pltpu.MemorySpace.SMEM),  # lmda (B,) f32
            ],
            out_specs=tile(lambda b, j, perm_s: (b, j, 0)),
        ),
        compiler_params=pltpu.CompilerParams(
            dimension_semantics=("parallel", "parallel"),
            vmem_limit_bytes=vmem_limit,
        ),
    )(perm.astype(jnp.int32), value_pad, value_pad,
      lmda.reshape(B).astype(jnp.float32))

    mixed_ranked = mixed_pad.reshape(B, pad_total)[:, :total].reshape(B, C, N)
    new_x = jnp.take_along_axis(mixed_ranked, inverse_index, axis=-1)
    return new_x.reshape(B, C, H, W)


def efdmix_reference(x, lmda, perm):
    """Pure-JAX reference mirroring the PyTorch forward (independent path)."""
    B, C, H, W = x.shape
    xv = x.reshape(B, C, -1)
    value_x = jnp.sort(xv, axis=-1)
    index_x = jnp.argsort(xv, axis=-1)
    inv = jnp.argsort(index_x, axis=-1)
    lm = lmda.reshape(B, 1, 1)
    out_ranked = value_x * lm + value_x[perm] * (1.0 - lm)
    new_x = jnp.take_along_axis(out_ranked, inv, axis=-1)
    return new_x.reshape(B, C, H, W)


if __name__ == "__main__":
    key = jax.random.PRNGKey(0)
    kx, kl, kp = jax.random.split(key, 3)

    B, C, H, W = 2, 4, 16, 16
    alpha = 0.1  # Beta distribution parameter from EFDMix.__init__

    x = jax.random.normal(kx, (B, C, H, W), dtype=jnp.float32)
    # TODO(synk): the Bernoulli(p) skip, Beta(alpha, alpha) sampling and randperm
    # are host/JAX-side RNG glue (done deterministically here), and the custom
    # Replace_with_grad autograd.Function only alters the backward pass, so it
    # does not affect the forward semantics implemented by the kernel.
    lmda = jax.random.beta(kl, alpha, alpha, (B,)).astype(jnp.float32)
    perm = jax.random.permutation(kp, B)

    out = jax.block_until_ready(efdmix_forward(x, lmda, perm))
    ref = efdmix_reference(x, lmda, perm)

    assert out.shape == (B, C, H, W)
    assert jnp.allclose(out, ref, atol=1e-5, rtol=1e-5), "mismatch vs JAX reference"

    print("KERNEL_OK")
</pallas_src>

<mosaic_0001>
module attributes {stable_mosaic.version = 11 : i64} {
  func.func @_efdmix_ranked_mix_kernel(%arg0: i32, %arg1: i32, %arg2: memref<2xi32, #tpu.memory_space<smem>>, %arg3: memref<1x8x128xf32, #tpu.memory_space<vmem>>, %arg4: memref<1x8x128xf32, #tpu.memory_space<vmem>>, %arg5: memref<2xf32, #tpu.memory_space<smem>>, %arg6: memref<1x8x128xf32, #tpu.memory_space<vmem>>) attributes {dimension_semantics = [#tpu.dimension_semantics<parallel>, #tpu.dimension_semantics<parallel>], iteration_bounds = array<i64: 2, 1>, scalar_prefetch = 1 : i64, scratch_operands = 0 : i64, tpu.core_type = #tpu.core_type<tc>, window_params = [{transform_indices = @transform_0, window_bounds = array<i64: 1, 8, 128>}, {transform_indices = @transform_1, window_bounds = array<i64: 1, 8, 128>}, {transform_indices = @transform_2, window_bounds = array<i64: 2>}, {transform_indices = @transform_3, window_bounds = array<i64: 1, 8, 128>}]} {
    %0 = arith.index_cast %arg0 : i32 to index
    %1 = memref.load %arg5[%0] : memref<2xf32, #tpu.memory_space<smem>>
    %c0 = arith.constant 0 : index
    %c0_0 = arith.constant 0 : index
    %c0_1 = arith.constant 0 : index
    %2 = vector.load %arg3[%c0, %c0_0, %c0_1] : memref<1x8x128xf32, #tpu.memory_space<vmem>>, vector<1x8x128xf32>
    %3 = vector.shape_cast %2 : vector<1x8x128xf32> to vector<8x128xf32>
    %4 = vector.broadcast %1 : f32 to vector<8x128xf32>
    %5 = arith.mulf %4, %3 : vector<8x128xf32>
    %cst = arith.constant 1.000000e+00 : f32
    %6 = arith.subf %cst, %1 : f32
    %c0_2 = arith.constant 0 : index
    %c0_3 = arith.constant 0 : index
    %c0_4 = arith.constant 0 : index
    %7 = vector.load %arg4[%c0_2, %c0_3, %c0_4] : memref<1x8x128xf32, #tpu.memory_space<vmem>>, vector<1x8x128xf32>
    %8 = vector.shape_cast %7 : vector<1x8x128xf32> to vector<8x128xf32>
    %9 = vector.broadcast %6 : f32 to vector<8x128xf32>
    %10 = arith.mulf %9, %8 : vector<8x128xf32>
    %11 = arith.addf %5, %10 : vector<8x128xf32>
    %c0_5 = arith.constant 0 : index
    %c0_6 = arith.constant 0 : index
    %c0_7 = arith.constant 0 : index
    %12 = vector.load %arg6[%c0_5, %c0_6, %c0_7] : memref<1x8x128xf32, #tpu.memory_space<vmem>>, vector<1x8x128xf32>
    %13 = vector.shape_cast %12 : vector<1x8x128xf32> to vector<8x128xf32>
    %14 = vector.shape_cast %11 : vector<8x128xf32> to vector<1x8x128xf32>
    tpu.vector_store %arg6[%c0_5, %c0_6, %c0_7], %14 {strides = array<i32>} : memref<1x8x128xf32, #tpu.memory_space<vmem>>, vector<1x8x128xf32>,
    return
  }
  func.func @transform_0(%arg0: i32, %arg1: i32, %arg2: memref<2xi32, #tpu.memory_space<smem>>) -> (i32, i32, i32) {
    %c0_i32 = arith.constant 0 : i32
    %c0_i32_0 = arith.constant 0 : i32
    return %arg0, %arg1, %c0_i32 : i32, i32, i32
  }
  func.func @transform_1(%arg0: i32, %arg1: i32, %arg2: memref<2xi32, #tpu.memory_space<smem>>) -> (i32, i32, i32) {
    %0 = arith.index_cast %arg0 : i32 to index
    %1 = memref.load %arg2[%0] : memref<2xi32, #tpu.memory_space<smem>>
    %c0_i32 = arith.constant 0 : i32
    %c0_i32_0 = arith.constant 0 : i32
    return %1, %arg1, %c0_i32 : i32, i32, i32
  }
  func.func @transform_2(%arg0: i32, %arg1: i32, %arg2: memref<2xi32, #tpu.memory_space<smem>>) -> i32 {
    %c0_i32 = arith.constant 0 : i32
    %c0_i32_0 = arith.constant 0 : i32
    return %c0_i32 : i32
  }
  func.func @transform_3(%arg0: i32, %arg1: i32, %arg2: memref<2xi32, #tpu.memory_space<smem>>) -> (i32, i32, i32) {
    %c0_i32 = arith.constant 0 : i32
    %c0_i32_0 = arith.constant 0 : i32
    return %arg0, %arg1, %c0_i32 : i32, i32, i32
  }
}

</mosaic_0001>

<llo_original>
// kernel: tpu_custom_call.1
$region0: #{tpu_custom_call.1}
  #allocation0 [shape = 'u32[]', space=smem, size = 0x4, offset = 0x4, fixed_abs, tag = 'smem constant byte address 0x4 - core index']
  #allocation1 [shape = 'u32[144,128]{1,0:T(1,128)}', space=vmem, size = 0x12000, scoped, tag = 'internal scratch']
  #allocation2 [shape = 's32[1]{0}', space=sflag, size = 0x4, scoped, tag = 'scoped memory for tpu_custom_call.1']
  #allocation3 [shape = 'u8[512]{0}', space=smem, size = 0x200, scoped, tag = 'prefetched SMEM operand 0']
  %s0 = inlined_call_operand.hbm [shape: s32[2], index: 0, kind: input, shape index: {}]
  %s1 = inlined_call_operand.hbm [shape: f32[2,8,128], index: 1, kind: input, shape index: {}]
  %s2 = inlined_call_operand.hbm [shape: f32[2,8,128], index: 2, kind: input, shape index: {}]
  %s3 = inlined_call_operand.vmem [shape: f32[2], index: 3, kind: input, shape index: {}]
  %s4 = inlined_call_operand.hbm [shape: f32[2,8,128], index: 4, kind: output, shape index: {}]
  %s5 = sld [smem:[#allocation0]]
  $region57: #{tpu_custom_call.1} parent=0
    _
  %s7 = ssub.s32 1, %s5
  %s8 = scalar_select 0, %s7, %s5
  %10 = dma.hbm_to_smem %s0, 16, [#allocation3], [#allocation2]
  %11 = dma.done [#allocation2], 16
  %12 = sfence
  $region1: #{tpu_custom_call.1} parent=0
    #allocation4 [shape = 'u8[8192]{0}', space=vmem, size = 0x2000, scoped, tag = 'input window, operand 1']
    #allocation5 [shape = 's32[2]{0}', space=sflag, size = 0x8, scoped, tag = 'scoped memory for tpu_custom_call.1']
    #allocation6 [shape = 's32[2]{0}', space=sflag, size = 0x8, scoped, tag = 'scoped memory for tpu_custom_call.1']
    #allocation7 [shape = 's32[2]{0}', space=sflag, size = 0x8, scoped, tag = 'scoped memory for tpu_custom_call.1']
    #allocation8 [shape = 'u8[8192]{0}', space=vmem, size = 0x2000, scoped, tag = 'input window, operand 2']
    #allocation9 [shape = 's32[2]{0}', space=sflag, size = 0x8, scoped, tag = 'scoped memory for tpu_custom_call.1']
    #allocation10 [shape = 'u8[512]{0}', space=smem, size = 0x200, scoped, tag = 'input window, operand 3, single buffered']
    #allocation11 [shape = 'u8[8192]{0}', space=vmem, size = 0x2000, scoped, tag = 'output window, operand 0']
    %13 = vsyncpa [#allocation5], 0
    %s14 = scalar_lea.sflag [#allocation5], 1
    %15 = vsyncpa %s14, 0
    %16 = vsyncpa [#allocation9], 0
    %s17 = scalar_lea.sflag [#allocation9], 1
    %18 = vsyncpa %s17, 0
    %19 = vsyncpa [#allocation7], 0
    %20 = vsyncpa [#allocation6], 0
    %s21 = scalar_lea.sflag [#allocation6], 1
    %22 = vsyncpa %s21, 0
    loop: start=0, step=1, limit=4
    $region2: #{tpu_custom_call.1} parent=1 // loop_pre_header
      _
    $region3: #{tpu_custom_call.1} parent=1 // loop_header
      %s24 = sphi 0, %s28
      %p25 = scmp.ge.s32.totalorder %s24, 4
      %s31 = sphi 0, %s43
      %s32 = sphi 0, %s39
      %s33 = sphi 0, %s31
      %s34 = sphi 0, %s32
      %s35 = sphi 0, %s33
      %s36 = sphi 0, %s34
      %s48 = sphi 0, %s50
      %s51 = sphi 0, %s48
      %s52 = sphi 0, %s51
      %s68 = sphi 0, %s52
      %s78 = sphi 0, %s80
      %s81 = sphi 0, %s78
      %s82 = sphi 0, %s81
      %s98 = sphi 0, %s82
      %s102 = sphi 0, %s102
      %s104 = sphi 0, %s102
      %s105 = sphi 0, %s104
      %s119 = sphi 0, %s105
      %s127 = sphi 0, %s129
      %s130 = sphi 0, %s127
      %s131 = sphi 0, %s130
      %s147 = sphi 0, %s131
    $region4: #{tpu_custom_call.1} parent=1 // loop_header_branch
      %27 = sbr.rel (%p25) target = $region8
    $region5: #{tpu_custom_call.1} parent=1 // loop_body
      %s29 = ssub.s32 %s24, 1
      %s30 = ssub.s32 %s24, 2
      %s37 = sadd.s32 1, %s32
      %p38 = scmp.ge.s32.totalorder %s37, 1
      %s39 = scalar_select %p38, 0, %s37
      %s40 = sadd.s32 1, %s31
      %s41 = scalar_select %p38, %s40, %s31
      %p42 = scmp.ge.s32.totalorder %s41, 2
      %s43 = scalar_select %p42, 0, %s41
      %s44 = ssub.s32 %s31, %s43
      %s45 = ssub.s32 %s32, %s39
      %s46 = sor.u32 %s44, %s45
      %p47 = scmp.eq.s32.totalorder %s46, 0
      %s49 = sadd.s32 %s48, 1
      %s50 = scalar_select %p47, %s48, %s49
      %p53 = pneg %p47
      %p54 = scmp.eq.s32.totalorder %s24, 1
      %p55 = por %p53, %p54
      %p56 = scmp.ne.s32.totalorder %s48, %s51
      %p57 = scmp.eq.s32.totalorder %s24, 0
      %p58 = por %p56, %p57
      %p59 = scmp.ne.s32.totalorder %s48, %s51
      %p60 = scmp.eq.s32.totalorder %s29, 1
      %p61 = por %p59, %p60
      %p62 = scmp.ne.s32.totalorder %s51, %s52
      %p63 = scmp.eq.s32.totalorder %s29, 0
      %p64 = por %p62, %p63
      %p65 = scmp.ne.s32.totalorder %s51, %s52
      %p66 = scmp.eq.s32.totalorder %s30, 1
      %p67 = por %p65, %p66
      %p69 = scmp.ne.s32.totalorder %s52, %s68
      %p70 = scmp.eq.s32.totalorder %s30, 0
      %p71 = por %p69, %p70
      %s72 = sld [smem:[#allocation3 + %s31]]
      %s73 = sld [smem:[#allocation3 + %s43]]
      %s74 = ssub.s32 %s72, %s73
      %s75 = ssub.s32 %s32, %s39
      %s76 = sor.u32 %s74, %s75
      %p77 = scmp.eq.s32.totalorder %s76, 0
      %s79 = sadd.s32 %s78, 1
      %s80 = scalar_select %p77, %s78, %s79
      %p83 = pneg %p77
      %p84 = scmp.eq.s32.totalorder %s24, 1
      %p85 = por %p83, %p84
      %p86 = scmp.ne.s32.totalorder %s78, %s81
      %p87 = scmp.eq.s32.totalorder %s24, 0
      %p88 = por %p86, %p87
      %p89 = scmp.ne.s32.totalorder %s78, %s81
      %p90 = scmp.eq.s32.totalorder %s29, 1
      %p91 = por %p89, %p90
      %p92 = scmp.ne.s32.totalorder %s81, %s82
      %p93 = scmp.eq.s32.totalorder %s29, 0
      %p94 = por %p92, %p93
      %p95 = scmp.ne.s32.totalorder %s81, %s82
      %p96 = scmp.eq.s32.totalorder %s30, 1
      %p97 = por %p95, %p96
      %p99 = scmp.ne.s32.totalorder %s82, %s98
      %p100 = scmp.eq.s32.totalorder %s30, 0
      %p101 = por %p99, %p100
      %s103 = sadd.s32 %s102, 1
      %p106 = scmp.eq.s32.totalorder %s24, 1
      %p107 = scmp.ne.s32.totalorder %s102, %s104
      %p108 = scmp.eq.s32.totalorder %s24, 0
      %p109 = por %p107, %p108
      %p110 = scmp.ne.s32.totalorder %s102, %s104
      %p111 = scmp.eq.s32.totalorder %s29, 1
      %p112 = por %p110, %p111
      %p113 = scmp.ne.s32.totalorder %s104, %s105
      %p114 = scmp.eq.s32.totalorder %s29, 0
      %p115 = por %p113, %p114
      %p116 = scmp.ne.s32.totalorder %s104, %s105
      %p117 = scmp.eq.s32.totalorder %s30, 1
      %p118 = por %p116, %p117
      %p120 = scmp.ne.s32.totalorder %s105, %s119
      %p121 = scmp.eq.s32.totalorder %s30, 0
      %p122 = por %p120, %p121
      %s123 = ssub.s32 %s31, %s43
      %s124 = ssub.s32 %s32, %s39
      %s125 = sor.u32 %s123, %s124
      %p126 = scmp.eq.s32.totalorder %s125, 0
      %s128 = sadd.s32 %s127, 1
      %s129 = scalar_select %p126, %s127, %s128
      %p132 = pneg %p126
      %p133 = scmp.eq.s32.totalorder %s24, 1
      %p134 = por %p132, %p133
      %p135 = scmp.ne.s32.totalorder %s127, %s130
      %p136 = scmp.eq.s32.totalorder %s24, 0
      %p137 = por %p135, %p136
      %p138 = scmp.ne.s32.totalorder %s127, %s130
      %p139 = scmp.eq.s32.totalorder %s29, 1
      %p140 = por %p138, %p139
      %p141 = scmp.ne.s32.totalorder %s130, %s131
      %p142 = scmp.eq.s32.totalorder %s29, 0
      %p143 = por %p141, %p142
      %p144 = scmp.ne.s32.totalorder %s130, %s131
      %p145 = scmp.eq.s32.totalorder %s30, 1
      %p146 = por %p144, %p145
      %p148 = scmp.ne.s32.totalorder %s131, %s147
      %p149 = scmp.eq.s32.totalorder %s30, 0
      %p150 = por %p148, %p149
      %p151 = scmp.le.s32.totalorder 1, %s24
      %p152 = scmp.lt.s32.totalorder %s24, 3
      %p153 = pnand %p151, %p152
      %p154 = pneg %p153
      // Predicated region
      $region9: #{tpu_custom_call.1} parent=5 // pred_check
        _
      $region10: #{tpu_custom_call.1} parent=5 // pred_check_branch
        %156 = sbr.rel (%p153) target = $region12
      $region11: #{tpu_custom_call.1} parent=5 // pred_region
        %s157 = ssub.s32 %s24, 1
        // Predicated region
        $region13: #{tpu_custom_call.1} parent=11 // pred_check
          %p158 = pneg %p115
        $region14: #{tpu_custom_call.1} parent=11 // pred_check_branch
          %160 = sbr.rel (%p158) target = $region16
        $region15: #{tpu_custom_call.1} parent=11 // pred_region
          %s162 = ssub.s32 16, 16
          %163 = vsyncadd [#allocation7], %s162
          %s165 = sshll.u32 %s3, 4
          %s166 = int_to_ptr.vmem [resolvable:$true] %s165
          %168 = dma.vmem_to_smem %s166, 16, [#allocation10], [#allocation7]
        $region16: #{tpu_custom_call.1} parent=11 // pred_fallthru
          _
      $region12: #{tpu_custom_call.1} parent=5 // pred_fallthru
        _
      %p169 = scmp.lt.s32.totalorder %s24, 2
      // Predicated region
      $region17: #{tpu_custom_call.1} parent=5 // pred_check
        %p170 = pneg %p169
      $region18: #{tpu_custom_call.1} parent=5 // pred_check_branch
        %172 = sbr.rel (%p170) target = $region20
      $region19: #{tpu_custom_call.1} parent=5 // pred_region
        // Predicated region
        $region21: #{tpu_custom_call.1} parent=19 // pred_check
          %p173 = pneg %p58
        $region22: #{tpu_custom_call.1} parent=19 // pred_check_branch
          %175 = sbr.rel (%p173) target = $region24
        $region23: #{tpu_custom_call.1} parent=19 // pred_region
          %s176 = sand.u32 %s48, 1
          %s177 = scalar_lea.sflag [#allocation5], %s176
          %s178 = sand.u32 %s48, 1
          %s179 = smul.addr %s178, 8
          %s180 = scalar_lea.vmem [#allocation4], %s179
          %s182 = ssub.s32 128, 128
          %183 = vsyncadd %s177, %s182
          %s184 = sadd.s32 %s32, %s31
          %s185 = smul.addr %s184, 128
          %s186 = scalar_lea.hbm %s1, %s185
          %s188 = sshll.u32 %s180, 4
          %s189 = int_to_ptr.vmem [resolvable:$true] %s188
          %191 = dma.hbm_to_vmem [thread:$0]  %s186, 128, %s189, %s177
        $region24: #{tpu_custom_call.1} parent=19 // pred_fallthru
          _
        // Predicated region
        $region25: #{tpu_custom_call.1} parent=19 // pred_check
          %p192 = pneg %p88
        $region26: #{tpu_custom_call.1} parent=19 // pred_check_branch
          %194 = sbr.rel (%p192) target = $region28
        $region27: #{tpu_custom_call.1} parent=19 // pred_region
          %s195 = sand.u32 %s78, 1
          %s196 = scalar_lea.sflag [#allocation9], %s195
          %s197 = sand.u32 %s78, 1
          %s198 = smul.addr %s197, 8
          %s199 = scalar_lea.vmem [#allocation8], %s198
          %s200 = sld [smem:[#allocation3 + %s31]]
          %s202 = ssub.s32 128, 128
          %203 = vsyncadd %s196, %s202
          %s204 = sadd.s32 %s32, %s200
          %s205 = smul.addr %s204, 128
          %s206 = scalar_lea.hbm %s2, %s205
          %s208 = sshll.u32 %s199, 4
          %s209 = int_to_ptr.vmem [resolvable:$true] %s208
          %211 = dma.hbm_to_vmem [thread:$0]  %s206, 128, %s209, %s196
        $region28: #{tpu_custom_call.1} parent=19 // pred_fallthru
          _
      $region20: #{tpu_custom_call.1} parent=5 // pred_fallthru
        _
      %p212 = scmp.le.s32.totalorder 1, %s24
      %p213 = scmp.lt.s32.totalorder %s24, 3
      %p214 = pnand %p212, %p213
      %p215 = pneg %p214
      // Predicated region
      $region29: #{tpu_custom_call.1} parent=5 // pred_check
        _
      $region30: #{tpu_custom_call.1} parent=5 // pred_check_branch
        %217 = sbr.rel (%p214) target = $region32
      $region31: #{tpu_custom_call.1} parent=5 // pred_region
        %s218 = ssub.s32 %s24, 1
        %s219 = sand.u32 %s51, 1
        %s220 = scalar_lea.sflag [#allocation5], %s219
        %s221 = sand.u32 %s51, 1
        %s222 = smul.addr %s221, 8
        %s223 = scalar_lea.vmem [#allocation4], %s222
        // Predicated region
        $region33: #{tpu_custom_call.1} parent=31 // pred_check
          %p224 = pneg %p64
        $region34: #{tpu_custom_call.1} parent=31 // pred_check_branch
          %226 = sbr.rel (%p224) target = $region36
        $region35: #{tpu_custom_call.1} parent=31 // pred_region
          %227 = dma.done %s220, 128
        $region36: #{tpu_custom_call.1} parent=31 // pred_fallthru
          _
        %s228 = sand.u32 %s81, 1
        %s229 = scalar_lea.sflag [#allocation9], %s228
        %s230 = sand.u32 %s81, 1
        %s231 = smul.addr %s230, 8
        %s232 = scalar_lea.vmem [#allocation8], %s231
        // Predicated region
        $region37: #{tpu_custom_call.1} parent=31 // pred_check
          %p233 = pneg %p94
        $region38: #{tpu_custom_call.1} parent=31 // pred_check_branch
          %235 = sbr.rel (%p233) target = $region40
        $region39: #{tpu_custom_call.1} parent=31 // pred_region
          %236 = dma.done %s229, 128
        $region40: #{tpu_custom_call.1} parent=31 // pred_fallthru
          _
        // Predicated region
        $region41: #{tpu_custom_call.1} parent=31 // pred_check
          %p237 = pneg %p115
        $region42: #{tpu_custom_call.1} parent=31 // pred_check_branch
          %239 = sbr.rel (%p237) target = $region44
        $region43: #{tpu_custom_call.1} parent=31 // pred_region
          %240 = dma.done [#allocation7], 16
        $region44: #{tpu_custom_call.1} parent=31 // pred_fallthru
          _
        %241 = sfence
        %s242 = sand.u32 %s51, 1
        %s243 = scalar_lea.sflag [#allocation5], %s242
        %s244 = sand.u32 %s51, 1
        %s245 = smul.addr %s244, 8
        %s246 = scalar_lea.vmem [#allocation4], %s245
        %p247 = pneg %p64
        %p248 = pneg %p61
        %s249 = sand.u32 %s81, 1
        %s250 = scalar_lea.sflag [#allocation9], %s249
        %s251 = sand.u32 %s81, 1
        %s252 = smul.addr %s251, 8
        %s253 = scalar_lea.vmem [#allocation8], %s252
        %p254 = pneg %p94
        %p255 = pneg %p91
        %p256 = pneg %p115
        %p257 = pneg %p112
        %p258 = pneg %p143
        %p259 = pneg %p140
        %s260 = sand.u32 %s130, 1
        %s261 = scalar_lea.sflag [#allocation6], %s260
        %s262 = sand.u32 %s130, 1
        %s263 = smul.addr %s262, 8
        %s264 = scalar_lea.vmem [#allocation11], %s263
        %s265 = sld [smem:[#allocation3 + %s33]]
        %s266 = sld [smem:[#allocation10 + %s33]]
        %v267 = vld [vmem:[%s223] sm:$0xff]
        %v268 = vstv %s266
        %v269 = vmul.f32 %v268, %v267
        %s270 = ssub.f32 1.0, %s266
        %v271 = vld [vmem:[%s232] sm:$0xff]
        %v272 = vstv %s270
        %v273 = vmul.f32 %v272, %v271
        %v274 = vadd.f32 %v269, %v273
        %275 = vst [vmem:[%s264] sm:$0xff] %v274
        %s276 = sand.u32 %s130, 1
        %s277 = scalar_lea.sflag [#allocation6], %s276
        %s278 = sand.u32 %s130, 1
        %s279 = smul.addr %s278, 8
        %s280 = scalar_lea.vmem [#allocation11], %s279
        // Predicated region
        $region45: #{tpu_custom_call.1} parent=31 // pred_check
          %p281 = pneg %p140
        $region46: #{tpu_custom_call.1} parent=31 // pred_check_branch
          %283 = sbr.rel (%p281) target = $region48
        $region47: #{tpu_custom_call.1} parent=31 // pred_region
          %s285 = ssub.s32 128, 128
          %286 = vsyncadd %s277, %s285
          %s287 = sadd.s32 %s34, %s33
          %s288 = smul.addr %s287, 128
          %s289 = scalar_lea.hbm %s4, %s288
          %s291 = sshll.u32 %s280, 4
          %s292 = int_to_ptr.vmem [resolvable:$true] %s291
          %294 = dma.vmem_to_hbm [thread:$0]  %s292, 128, %s289, %s277
        $region48: #{tpu_custom_call.1} parent=31 // pred_fallthru
          _
      $region32: #{tpu_custom_call.1} parent=5 // pred_fallthru
        _
      %p295 = scmp.le.s32.totalorder 2, %s24
      // Predicated region
      $region49: #{tpu_custom_call.1} parent=5 // pred_check
        %p296 = pneg %p295
      $region50: #{tpu_custom_call.1} parent=5 // pred_check_branch
        %298 = sbr.rel (%p296) target = $region52
      $region51: #{tpu_custom_call.1} parent=5 // pred_region
        %s299 = ssub.s32 %s24, 2
        // Predicated region
        $region53: #{tpu_custom_call.1} parent=51 // pred_check
          %p300 = pneg %p146
        $region54: #{tpu_custom_call.1} parent=51 // pred_check_branch
          %302 = sbr.rel (%p300) target = $region56
        $region55: #{tpu_custom_call.1} parent=51 // pred_region
          %s303 = sand.u32 %s131, 1
          %s304 = scalar_lea.sflag [#allocation6], %s303
          %s305 = sand.u32 %s131, 1
          %s306 = smul.addr %s305, 8
          %s307 = scalar_lea.vmem [#allocation11], %s306
          %308 = dma.done %s304, 128
        $region56: #{tpu_custom_call.1} parent=51 // pred_fallthru
          _
      $region52: #{tpu_custom_call.1} parent=5 // pred_fallthru
        _
    $region6: #{tpu_custom_call.1} parent=1 // loop_footer
      %s28 = sadd.s32 1, %s24
    $region7: #{tpu_custom_call.1} parent=1 // loop_footer_branch
      %23 = sbr.rel target = $region3
    $region8: #{tpu_custom_call.1} parent=1 // loop_exit
      _
    %309 = vsyncpa [#allocation5], 1
    %s310 = scalar_lea.sflag [#allocation5], 1
    %311 = vsyncpa %s310, 1
    %312 = vsyncpa [#allocation9], 1
    %s313 = scalar_lea.sflag [#allocation9], 1
    %314 = vsyncpa %s313, 1
    %315 = vsyncpa [#allocation6], 1
    %s316 = scalar_lea.sflag [#allocation6], 1
    %317 = vsyncpa %s316, 1
    %318 = vsyncpa [#allocation7], 1
    %s319 = scalar_lea.sflag [#allocation7], 1
    %320 = vsyncpa %s319, 1

</llo_original>
